<compile_context>
chip_gen: v6e
topology: v6e:2x2x1
jax: 0.10.0
libtpu: 0.0.40
codegen_flags: <defaults>
</compile_context>

<pallas_src>
import functools

import jax
import jax.numpy as jnp
from jax import lax
from jax.experimental import pallas as pl
from jax.experimental.pallas import tpu as pltpu


# ----------------------------- Pallas kernel -------------------------------
def _closs_kernel(feat_r_ref, feat_c_ref, lab_r_ref, lab_c_ref, out_ref, *, inv_temp):
    r = pl.program_id(1)
    bt, tr, _ = feat_r_ref.shape
    n = feat_c_ref.shape[2]

    feat_r = feat_r_ref[...]                      # (Bt, Tr, C) f32, rows
    feat_c = feat_c_ref[...]                      # (Bt, C, N)  f32, columns (lane-dense)

    # F.normalize(p=2, dim=channel) with eps=1e-12:  x * rsqrt(max(|x|^2, 1e-24)).
    # Fold 1/temperature into the row side so the N x N divide pass disappears.
    sq_r = jnp.sum(feat_r * feat_r, axis=2, keepdims=True)               # (Bt, Tr, 1)
    feat_r = feat_r * (lax.rsqrt(jnp.maximum(sq_r, 1e-24)) * inv_temp)
    sq_c = jnp.sum(feat_c * feat_c, axis=1, keepdims=True)               # (Bt, 1, N)
    feat_c = feat_c * lax.rsqrt(jnp.maximum(sq_c, 1e-24))

    # (Bt, Tr, N) = (rows . cols) / temperature, f32 accumulation on the MXU.
    logits = jnp.einsum("brc,bcn->brn", feat_r, feat_c,
                        preferred_element_type=jnp.float32)

    # Zero the (global) diagonal of this row tile: logits * diag_mask in torch.
    row_ids = lax.broadcasted_iota(jnp.int32, (tr, n), 0) + r * tr
    col_ids = lax.broadcasted_iota(jnp.int32, (tr, n), 1)
    diag = (row_ids == col_ids)[None]                                    # (1, Tr, N) bool
    logits = jnp.where(diag, 0.0, logits)

    # Off-diagonal same-label positives (kept boolean, never an f32 N x N mask).
    pos = (lab_r_ref[...] == lab_c_ref[...]) & jnp.logical_not(diag)     # (Bt, Tr, N)

    row_max = jnp.max(logits, axis=2, keepdims=True)                     # (Bt, Tr, 1)
    shifted = logits - row_max
    log_z = jnp.log(jnp.sum(jnp.exp(shifted), axis=2, keepdims=True) + 1e-12)

    pos_cnt = jnp.sum(pos.astype(jnp.float32), axis=2, keepdims=True)    # (Bt, Tr, 1)
    pos_sum = jnp.sum(jnp.where(pos, shifted, 0.0), axis=2, keepdims=True)
    denom = jnp.where(pos_cnt == 0.0, 1.0, pos_cnt)
    # Since mask is 0/1:  sum(mask * log_prob) = sum(mask*shifted) - count*log(Z).
    pos_logits = (pos_sum - pos_cnt * log_z) / denom                     # (Bt, Tr, 1)

    partial = jnp.sum(pos_logits, axis=1, keepdims=True)                 # (Bt, 1, 1)

    @pl.when(r == 0)
    def _():
        out_ref[...] = partial

    @pl.when(r > 0)
    def _():
        out_ref[...] += partial


def _largest_divisor_leq(x, cap):
    cap = max(1, min(cap, x))
    for d in range(cap, 0, -1):
        if x % d == 0:
            return d
    return 1


def _pick_row_tile(n):
    # Keep the Tr x N f32 working tile around <= ~2 MiB when possible;
    # Tr is either N or a multiple of 128 dividing N (BlockSpec-friendly).
    if n <= 512:
        return n
    budget_rows = max(128, (2 * 1024 * 1024) // (4 * n))
    best = None
    t = 128
    while t <= n:
        if n % t == 0 and t <= budget_rows:
            best = t
        t += 128
    return best if best is not None else n


def _closs_pallas(feat_nc, feat_cn, lab_col, lab_row, *, temperature):
    B, N, C = feat_nc.shape
    tr = _pick_row_tile(N)
    # Pack several images per grid step when tiles are small (fill the machine).
    bt = _largest_divisor_leq(B, max(1, (2 * 1024 * 1024) // (tr * N * 4)))
    grid = (B // bt, N // tr)

    out = pl.pallas_call(
        functools.partial(_closs_kernel, inv_temp=1.0 / float(temperature)),
        out_shape=jax.ShapeDtypeStruct((B, 1, 1), jnp.float32),
        grid=grid,
        in_specs=[
            pl.BlockSpec((bt, tr, C), lambda b, r: (b, r, 0)),   # row features (N, C)
            pl.BlockSpec((bt, C, N), lambda b, r: (b, 0, 0)),    # col features (C, N), resident
            pl.BlockSpec((bt, tr, 1), lambda b, r: (b, r, 0)),   # row labels (column view)
            pl.BlockSpec((bt, 1, N), lambda b, r: (b, 0, 0)),    # col labels (row view), resident
        ],
        out_specs=pl.BlockSpec((bt, 1, 1), lambda b, r: (b, 0, 0)),
        compiler_params=pltpu.CompilerParams(
            dimension_semantics=("parallel", "arbitrary"),
            vmem_limit_bytes=48 * 1024 * 1024,
        ),
    )(feat_nc, feat_cn, lab_col, lab_row)

    # torch: loss = -mean_b( sum_i pos_logits_i / (size*size) )
    return -jnp.mean(out[:, 0, 0]) / float(N)


# ------------------------------- glue (JAX) --------------------------------
# TODO(synk): the resampling below (F.interpolate bilinear/nearest) stays as
# JAX gather glue; a Pallas DMA-gather version is possible but not worthwhile.
def _bilinear_align_corners(x, size):
    # x: (B, C, H, W) -> (B, C, size, size); matches F.interpolate(mode='bilinear',
    # align_corners=True).
    B, C, H, W = x.shape
    if size == 1:
        ys = jnp.zeros((1,), jnp.float32)
        xs = jnp.zeros((1,), jnp.float32)
    else:
        ys = jnp.arange(size, dtype=jnp.float32) * ((H - 1) / (size - 1))
        xs = jnp.arange(size, dtype=jnp.float32) * ((W - 1) / (size - 1))
    y0 = jnp.floor(ys).astype(jnp.int32)
    x0 = jnp.floor(xs).astype(jnp.int32)
    y1 = jnp.minimum(y0 + 1, H - 1)
    x1 = jnp.minimum(x0 + 1, W - 1)
    wy = (ys - y0.astype(jnp.float32))[None, None, :, None]
    wx = (xs - x0.astype(jnp.float32))[None, None, None, :]
    top = x[:, :, y0, :]
    bot = x[:, :, y1, :]
    v = top * (1.0 - wy) + bot * wy
    left = v[:, :, :, x0]
    right = v[:, :, :, x1]
    return left * (1.0 - wx) + right * wx


def _nearest(x, size):
    # x: (B, 1, H, W) -> (B, 1, size, size); matches F.interpolate(mode='nearest').
    B, C, H, W = x.shape
    yi = jnp.floor(jnp.arange(size, dtype=jnp.float32) * (H / size)).astype(jnp.int32)
    xi = jnp.floor(jnp.arange(size, dtype=jnp.float32) * (W / size)).astype(jnp.int32)
    return x[:, :, yi, :][:, :, :, xi]


def closs_forward(output, label, *, size, temperature):
    """Forward of CLoss_1. output: (B,C,H,W) f32, label: (B,1,256,256) f32."""
    B = label.shape[0]
    assert label.shape == (B, 1, 256, 256)
    N = size * size

    out_r = _bilinear_align_corners(output.astype(jnp.float32), size)   # (B,C,s,s)
    lab_r = _nearest(label.astype(jnp.float32), size)                   # (B,1,s,s)

    C = out_r.shape[1]
    feat_cn = out_r.reshape(B, C, N)                                    # (B, C, N), lane-dense
    feat_nc = jnp.transpose(feat_cn, (0, 2, 1))                         # (B, N, C) for row tiles
    lab_flat = lab_r.reshape(B, N)
    lab_col = lab_flat.reshape(B, N, 1)
    lab_row = lab_flat.reshape(B, 1, N)

    return _closs_pallas(feat_nc, feat_cn, lab_col, lab_row, temperature=temperature)


# -------------------------- pure-JAX reference ------------------------------
def _closs_reference(feat_nc, lab_flat, temperature):
    B, N, C = feat_nc.shape
    norm = jnp.maximum(jnp.sqrt(jnp.sum(feat_nc * feat_nc, axis=2, keepdims=True)), 1e-12)
    f = feat_nc / norm
    dot = jnp.einsum("bnc,bmc->bnm", f, f)
    logits = dot / temperature
    lab_col = lab_flat[:, :, None]
    lab_row = lab_flat[:, None, :]
    mask = (lab_col == lab_row).astype(jnp.float32)
    diag_mask = 1.0 - jnp.eye(N, dtype=jnp.float32)[None]
    mask = mask * diag_mask
    logits = logits * diag_mask
    lmax = jnp.max(logits, axis=2, keepdims=True)
    logits = logits - lmax
    exp_logits = jnp.exp(logits)
    logits = logits * mask
    log_prob = logits - jnp.log(jnp.sum(exp_logits, axis=2, keepdims=True) + 1e-12)
    mask_sum = jnp.sum(mask, axis=2)
    mask_sum = jnp.where(mask_sum == 0.0, 1.0, mask_sum)
    pos_logits = jnp.sum(mask * log_prob, axis=2) / mask_sum
    loss = jnp.sum(pos_logits, axis=1) / N
    return -jnp.mean(loss)


if __name__ == "__main__":
    key = jax.random.PRNGKey(0)
    k1, k2 = jax.random.split(key)

    B, C, H, W = 2, 4, 16, 16
    size = 8           # -> N = 64 positions per image
    temperature = 0.1

    output = jax.random.normal(k1, (B, C, H, W), dtype=jnp.float32)
    label = jax.random.randint(k2, (B, 1, 256, 256), 0, 4).astype(jnp.float32)

    loss_fn = jax.jit(functools.partial(closs_forward, size=size, temperature=temperature))
    loss = loss_fn(output, label)
    jax.block_until_ready(loss)
    assert loss.shape == () and jnp.isfinite(loss)

    # Self-check against a dense pure-JAX implementation of the torch math.
    out_r = _bilinear_align_corners(output, size)
    lab_r = _nearest(label, size)
    feat_nc = jnp.transpose(out_r.reshape(B, C, size * size), (0, 2, 1))
    lab_flat = lab_r.reshape(B, size * size)
    loss_ref = _closs_reference(feat_nc, lab_flat, temperature)
    assert jnp.allclose(loss, loss_ref, rtol=1e-3, atol=1e-3), (loss, loss_ref)

    print("KERNEL_OK")
</pallas_src>

<mosaic_0001>
module attributes {stable_mosaic.version = 11 : i64} {
  func.func @_closs_kernel(%arg0: i32, %arg1: i32, %arg2: memref<2x64x4xf32, #tpu.memory_space<vmem>>, %arg3: memref<2x4x64xf32, #tpu.memory_space<vmem>>, %arg4: memref<2x64x1xf32, #tpu.memory_space<vmem>>, %arg5: memref<2x1x64xf32, #tpu.memory_space<vmem>>, %arg6: memref<2x1x1xf32, #tpu.memory_space<vmem>>) attributes {dimension_semantics = [#tpu.dimension_semantics<parallel>, #tpu.dimension_semantics<arbitrary>], iteration_bounds = array<i64: 1, 1>, scalar_prefetch = 0 : i64, scratch_operands = 0 : i64, tpu.core_type = #tpu.core_type<tc>, window_params = [{transform_indices = @transform_0, window_bounds = array<i64: 2, 64, 4>}, {transform_indices = @transform_1, window_bounds = array<i64: 2, 4, 64>}, {transform_indices = @transform_2, window_bounds = array<i64: 2, 64, 1>}, {transform_indices = @transform_3, window_bounds = array<i64: 2, 1, 64>}, {transform_indices = @transform_4, window_bounds = array<i64: 2, 1, 1>}]} {
    %c0 = arith.constant 0 : index
    %c0_0 = arith.constant 0 : index
    %c0_1 = arith.constant 0 : index
    %0 = vector.load %arg2[%c0, %c0_0, %c0_1] : memref<2x64x4xf32, #tpu.memory_space<vmem>>, vector<2x64x4xf32>
    %c0_2 = arith.constant 0 : index
    %c0_3 = arith.constant 0 : index
    %c0_4 = arith.constant 0 : index
    %1 = vector.load %arg3[%c0_2, %c0_3, %c0_4] : memref<2x4x64xf32, #tpu.memory_space<vmem>>, vector<2x4x64xf32>
    %2 = arith.mulf %0, %0 : vector<2x64x4xf32>
    %cst = arith.constant dense<0.000000e+00> : vector<2x64xf32>
    %3 = vector.multi_reduction <add>, %2, %cst [2] : vector<2x64x4xf32> to vector<2x64xf32>
    %4 = vector.shape_cast %3 : vector<2x64xf32> to vector<2x64x1xf32>
    %cst_5 = arith.constant 1.000000e-24 : f32
    %5 = vector.broadcast %cst_5 : f32 to vector<2x64x1xf32>
    %6 = arith.maximumf %4, %5 : vector<2x64x1xf32>
    %7 = math.rsqrt %6 : vector<2x64x1xf32>
    %cst_6 = arith.constant 1.000000e+01 : f32
    %8 = vector.broadcast %cst_6 : f32 to vector<2x64x1xf32>
    %9 = arith.mulf %7, %8 : vector<2x64x1xf32>
    %10 = vector.broadcast %9 : vector<2x64x1xf32> to vector<2x64x4xf32>
    %11 = arith.mulf %0, %10 : vector<2x64x4xf32>
    %12 = arith.mulf %1, %1 : vector<2x4x64xf32>
    %cst_7 = arith.constant dense<0.000000e+00> : vector<2x64xf32>
    %13 = vector.multi_reduction <add>, %12, %cst_7 [1] : vector<2x4x64xf32> to vector<2x64xf32>
    %14 = vector.shape_cast %13 : vector<2x64xf32> to vector<2x1x64xf32>
    %cst_8 = arith.constant 1.000000e-24 : f32
    %15 = vector.broadcast %cst_8 : f32 to vector<2x1x64xf32>
    %16 = arith.maximumf %14, %15 : vector<2x1x64xf32>
    %17 = math.rsqrt %16 : vector<2x1x64xf32>
    %18 = vector.broadcast %17 : vector<2x1x64xf32> to vector<2x4x64xf32>
    %19 = arith.mulf %1, %18 : vector<2x4x64xf32>
    "tpu.trace_start"() <{level = 10 : i32, message = "brc,bcn->brn"}> : () -> ()
    %cst_9 = arith.constant dense<0.000000e+00> : vector<2x64x64xf32>
    %20 = tpu.matmul %11, %19, %cst_9 {dimension_numbers = #tpu.dot_dimension_numbers<[2], [1], [1], [2], [0, 0, 0, 1, 1, 2], [0], [0]>} : vector<2x64x4xf32>, vector<2x4x64xf32>, vector<2x64x64xf32> -> vector<2x64x64xf32>
    "tpu.trace_stop"() : () -> ()
    %21 = tpu.iota {dimensions = array<i32: 0>} : vector<64x64xi32>
    %c64_i32 = arith.constant 64 : i32
    %22 = arith.muli %arg1, %c64_i32 : i32
    %23 = vector.broadcast %22 : i32 to vector<64x64xi32>
    %24 = arith.addi %21, %23 : vector<64x64xi32>
    %25 = tpu.iota {dimensions = array<i32: 1>} : vector<64x64xi32>
    %26 = arith.cmpi eq, %24, %25 : vector<64x64xi32>
    %27 = vector.shape_cast %26 : vector<64x64xi1> to vector<1x64x64xi1>
    %cst_10 = arith.constant 0.000000e+00 : f32
    %28 = vector.shape_cast %27 : vector<1x64x64xi1> to vector<1x64x64xi1>
    %29 = vector.broadcast %28 : vector<1x64x64xi1> to vector<2x64x64xi1>
    %30 = vector.broadcast %cst_10 : f32 to vector<2x64x64xf32>
    %31 = arith.select %29, %30, %20 : vector<2x64x64xi1>, vector<2x64x64xf32>
    %c0_11 = arith.constant 0 : index
    %c0_12 = arith.constant 0 : index
    %c0_13 = arith.constant 0 : index
    %32 = vector.load %arg4[%c0_11, %c0_12, %c0_13] : memref<2x64x1xf32, #tpu.memory_space<vmem>>, vector<2x64x1xf32>
    %c0_14 = arith.constant 0 : index
    %c0_15 = arith.constant 0 : index
    %c0_16 = arith.constant 0 : index
    %33 = vector.load %arg5[%c0_14, %c0_15, %c0_16] : memref<2x1x64xf32, #tpu.memory_space<vmem>>, vector<2x1x64xf32>
    %34 = vector.broadcast %32 : vector<2x64x1xf32> to vector<2x64x64xf32>
    %35 = vector.broadcast %33 : vector<2x1x64xf32> to vector<2x64x64xf32>
    %36 = arith.cmpf oeq, %34, %35 : vector<2x64x64xf32>
    %cst_17 = arith.constant dense<true> : vector<1x64x64xi1>
    %37 = arith.xori %27, %cst_17 : vector<1x64x64xi1>
    %38 = vector.broadcast %37 : vector<1x64x64xi1> to vector<2x64x64xi1>
    %39 = arith.andi %36, %38 : vector<2x64x64xi1>
    %cst_18 = arith.constant dense<0xFF800000> : vector<2x64xf32>
    %40 = vector.multi_reduction <maximumf>, %31, %cst_18 [2] : vector<2x64x64xf32> to vector<2x64xf32>
    %41 = vector.shape_cast %40 : vector<2x64xf32> to vector<2x64x1xf32>
    %42 = vector.broadcast %41 : vector<2x64x1xf32> to vector<2x64x64xf32>
    %43 = arith.subf %31, %42 : vector<2x64x64xf32>
    %44 = math.exp %43 : vector<2x64x64xf32>
    %cst_19 = arith.constant dense<0.000000e+00> : vector<2x64xf32>
    %45 = vector.multi_reduction <add>, %44, %cst_19 [2] : vector<2x64x64xf32> to vector<2x64xf32>
    %46 = vector.shape_cast %45 : vector<2x64xf32> to vector<2x64x1xf32>
    %cst_20 = arith.constant 9.99999996E-13 : f32
    %47 = vector.broadcast %cst_20 : f32 to vector<2x64x1xf32>
    %48 = arith.addf %46, %47 : vector<2x64x1xf32>
    %49 = math.log %48 : vector<2x64x1xf32>
    %50 = arith.extui %39 : vector<2x64x64xi1> to vector<2x64x64xi32>
    %51 = arith.sitofp %50 : vector<2x64x64xi32> to vector<2x64x64xf32>
    %cst_21 = arith.constant dense<0.000000e+00> : vector<2x64xf32>
    %52 = vector.multi_reduction <add>, %51, %cst_21 [2] : vector<2x64x64xf32> to vector<2x64xf32>
    %53 = vector.shape_cast %52 : vector<2x64xf32> to vector<2x64x1xf32>
    %cst_22 = arith.constant 0.000000e+00 : f32
    %54 = vector.broadcast %cst_22 : f32 to vector<2x64x64xf32>
    %55 = arith.select %39, %43, %54 : vector<2x64x64xi1>, vector<2x64x64xf32>
    %cst_23 = arith.constant dense<0.000000e+00> : vector<2x64xf32>
    %56 = vector.multi_reduction <add>, %55, %cst_23 [2] : vector<2x64x64xf32> to vector<2x64xf32>
    %57 = vector.shape_cast %56 : vector<2x64xf32> to vector<2x64x1xf32>
    %cst_24 = arith.constant 0.000000e+00 : f32
    %58 = vector.broadcast %cst_24 : f32 to vector<2x64x1xf32>
    %59 = arith.cmpf oeq, %53, %58 : vector<2x64x1xf32>
    %cst_25 = arith.constant 1.000000e+00 : f32
    %60 = vector.broadcast %cst_25 : f32 to vector<2x64x1xf32>
    %61 = arith.select %59, %60, %53 : vector<2x64x1xi1>, vector<2x64x1xf32>
    %62 = arith.mulf %53, %49 : vector<2x64x1xf32>
    %63 = arith.subf %57, %62 : vector<2x64x1xf32>
    %64 = arith.divf %63, %61 : vector<2x64x1xf32>
    %cst_26 = arith.constant dense<0.000000e+00> : vector<2x1xf32>
    %65 = vector.multi_reduction <add>, %64, %cst_26 [1] : vector<2x64x1xf32> to vector<2x1xf32>
    %66 = vector.shape_cast %65 : vector<2x1xf32> to vector<2x1x1xf32>
    %c0_i32 = arith.constant 0 : i32
    %67 = arith.cmpi eq, %arg1, %c0_i32 : i32
    %68 = arith.extui %67 : i1 to i32
    %c0_i32_27 = arith.constant 0 : i32
    %69 = arith.cmpi ne, %68, %c0_i32_27 : i32
    scf.if %69 {
      %c0_30 = arith.constant 0 : index
      %c0_31 = arith.constant 0 : index
      %c0_32 = arith.constant 0 : index
      %73 = vector.load %arg6[%c0_30, %c0_31, %c0_32] : memref<2x1x1xf32, #tpu.memory_space<vmem>>, vector<2x1x1xf32>
      tpu.vector_store %arg6[%c0_30, %c0_31, %c0_32], %66 {strides = array<i32>} : memref<2x1x1xf32, #tpu.memory_space<vmem>>, vector<2x1x1xf32>,
    } else {
    }
    %c0_i32_28 = arith.constant 0 : i32
    %70 = arith.cmpi sgt, %arg1, %c0_i32_28 : i32
    %71 = arith.extui %70 : i1 to i32
    %c0_i32_29 = arith.constant 0 : i32
    %72 = arith.cmpi ne, %71, %c0_i32_29 : i32
    scf.if %72 {
      %c0_30 = arith.constant 0 : index
      %c0_31 = arith.constant 0 : index
      %c0_32 = arith.constant 0 : index
      %73 = vector.load %arg6[%c0_30, %c0_31, %c0_32] : memref<2x1x1xf32, #tpu.memory_space<vmem>>, vector<2x1x1xf32>
      %74 = arith.addf %73, %66 : vector<2x1x1xf32>
      %c0_33 = arith.constant 0 : index
      %c0_34 = arith.constant 0 : index
      %c0_35 = arith.constant 0 : index
      %75 = vector.load %arg6[%c0_33, %c0_34, %c0_35] : memref<2x1x1xf32, #tpu.memory_space<vmem>>, vector<2x1x1xf32>
      tpu.vector_store %arg6[%c0_33, %c0_34, %c0_35], %74 {strides = array<i32>} : memref<2x1x1xf32, #tpu.memory_space<vmem>>, vector<2x1x1xf32>,
    } else {
    }
    return
  }
  func.func @transform_0(%arg0: i32, %arg1: i32) -> (i32, i32, i32) {
    %c0_i32 = arith.constant 0 : i32
    %c0_i32_0 = arith.constant 0 : i32
    return %arg0, %arg1, %c0_i32 : i32, i32, i32
  }
  func.func @transform_1(%arg0: i32, %arg1: i32) -> (i32, i32, i32) {
    %c0_i32 = arith.constant 0 : i32
    %c0_i32_0 = arith.constant 0 : i32
    %c0_i32_1 = arith.constant 0 : i32
    return %arg0, %c0_i32, %c0_i32_0 : i32, i32, i32
  }
  func.func @transform_2(%arg0: i32, %arg1: i32) -> (i32, i32, i32) {
    %c0_i32 = arith.constant 0 : i32
    %c0_i32_0 = arith.constant 0 : i32
    return %arg0, %arg1, %c0_i32 : i32, i32, i32
  }
  func.func @transform_3(%arg0: i32, %arg1: i32) -> (i32, i32, i32) {
    %c0_i32 = arith.constant 0 : i32
    %c0_i32_0 = arith.constant 0 : i32
    %c0_i32_1 = arith.constant 0 : i32
    return %arg0, %c0_i32, %c0_i32_0 : i32, i32, i32
  }
  func.func @transform_4(%arg0: i32, %arg1: i32) -> (i32, i32, i32) {
    %c0_i32 = arith.constant 0 : i32
    %c0_i32_0 = arith.constant 0 : i32
    %c0_i32_1 = arith.constant 0 : i32
    return %arg0, %c0_i32, %c0_i32_0 : i32, i32, i32
  }
}

</mosaic_0001>

<llo_original>
// kernel: closs_forward.1
$region0: #{closs_forward.1}
  #allocation0 [shape = 'u32[]', space=smem, size = 0x4, offset = 0x4, fixed_abs, tag = 'smem constant byte address 0x4 - core index']
  #allocation1 [shape = 'u32[144,128]{1,0:T(1,128)}', space=vmem, size = 0x12000, scoped, tag = 'internal scratch']
  %s0 = inlined_call_operand.vmem [shape: f32[2,64,4], index: 0, kind: input, shape index: {}]
  %s1 = inlined_call_operand.vmem [shape: f32[2,4,64], index: 1, kind: input, shape index: {}]
  %s2 = inlined_call_operand.vmem [shape: f32[2,64,1], index: 2, kind: input, shape index: {}]
  %s3 = inlined_call_operand.vmem [shape: f32[2,1,64], index: 3, kind: input, shape index: {}]
  %s4 = inlined_call_operand.vmem [shape: f32[2,1,1], index: 4, kind: output, shape index: {}]
  %s5 = sld [smem:[#allocation0]]
  $region34: #{closs_forward.1} parent=0
    _
  %s7 = ssub.s32 1, %s5
  %s8 = scalar_select 0, %s7, %s5
  // Predicated region
  $region2: #{closs_forward.1} parent=0 // pred_check
    _
  $region3: #{closs_forward.1} parent=0 // pred_check_branch
    %10 = sbr.rel (0) target = $region5
  $region4: #{closs_forward.1} parent=0 // pred_region
    _
  $region5: #{closs_forward.1} parent=0 // pred_fallthru
    _
  // Predicated region
  $region6: #{closs_forward.1} parent=0 // pred_check
    _
  $region7: #{closs_forward.1} parent=0 // pred_check_branch
    %12 = sbr.rel (0) target = $region9
  $region8: #{closs_forward.1} parent=0 // pred_region
    _
  $region9: #{closs_forward.1} parent=0 // pred_fallthru
    _
  // Predicated region
  $region10: #{closs_forward.1} parent=0 // pred_check
    _
  $region11: #{closs_forward.1} parent=0 // pred_check_branch
    %14 = sbr.rel (0) target = $region13
  $region12: #{closs_forward.1} parent=0 // pred_region
    _
  $region13: #{closs_forward.1} parent=0 // pred_fallthru
    _
  // Predicated region
  $region14: #{closs_forward.1} parent=0 // pred_check
    _
  $region15: #{closs_forward.1} parent=0 // pred_check_branch
    %16 = sbr.rel (0) target = $region17
  $region16: #{closs_forward.1} parent=0 // pred_region
    _
  $region17: #{closs_forward.1} parent=0 // pred_fallthru
    _
  %v17 = vld [vmem:[%s0] sm:$0xff]
  %v18 = vld [vmem:[%s0 + $0x8] sm:$0xff]
  %v19 = vld [vmem:[%s0 + $0x10] sm:$0xff]
  %v20 = vld [vmem:[%s0 + $0x18] sm:$0xff]
  %v21 = vld [vmem:[%s0 + $0x20] sm:$0xff]
  %v22 = vld [vmem:[%s0 + $0x28] sm:$0xff]
  %v23 = vld [vmem:[%s0 + $0x30] sm:$0xff]
  %v24 = vld [vmem:[%s0 + $0x38] sm:$0xff]
  %v25 = vld [vmem:[%s0 + $0x40] sm:$0xff]
  %v26 = vld [vmem:[%s0 + $0x48] sm:$0xff]
  %v27 = vld [vmem:[%s0 + $0x50] sm:$0xff]
  %v28 = vld [vmem:[%s0 + $0x58] sm:$0xff]
  %v29 = vld [vmem:[%s0 + $0x60] sm:$0xff]
  %v30 = vld [vmem:[%s0 + $0x68] sm:$0xff]
  %v31 = vld [vmem:[%s0 + $0x70] sm:$0xff]
  %v32 = vld [vmem:[%s0 + $0x78] sm:$0xff]
  %v33 = vld [vmem:[%s1] sm:$0xf]
  %v34 = vld [vmem:[%s1 + $0x4] sm:$0xf]
  %v35 = vmul.f32 %v17, %v17
  %v36 = vmul.f32 %v18, %v18
  %v37 = vmul.f32 %v19, %v19
  %v38 = vmul.f32 %v20, %v20
  %v39 = vmul.f32 %v21, %v21
  %v40 = vmul.f32 %v22, %v22
  %v41 = vmul.f32 %v23, %v23
  %v42 = vmul.f32 %v24, %v24
  %v43 = vmul.f32 %v25, %v25
  %v44 = vmul.f32 %v26, %v26
  %v45 = vmul.f32 %v27, %v27
  %v46 = vmul.f32 %v28, %v28
  %v47 = vmul.f32 %v29, %v29
  %v48 = vmul.f32 %v30, %v30
  %v49 = vmul.f32 %v31, %v31
  %v50 = vmul.f32 %v32, %v32
  %vm51 = vcmask 31744
  %v52 = vsel %vm51, %v35, 0.0
  %53 = vadd.xlane.f32.xlu0 %v52
  %v54 = vpop.xlane.xlu0 %53
  %v55 = vsel %vm51, %v36, 0.0
  %56 = vadd.xlane.f32.xlu0 %v55
  %v57 = vpop.xlane.xlu0 %56
  %v58 = vsel %vm51, %v37, 0.0
  %59 = vadd.xlane.f32.xlu0 %v58
  %v60 = vpop.xlane.xlu0 %59
  %v61 = vsel %vm51, %v38, 0.0
  %62 = vadd.xlane.f32.xlu0 %v61
  %v63 = vpop.xlane.xlu0 %62
  %v64 = vsel %vm51, %v39, 0.0
  %65 = vadd.xlane.f32.xlu0 %v64
  %v66 = vpop.xlane.xlu0 %65
  %v67 = vsel %vm51, %v40, 0.0
  %68 = vadd.xlane.f32.xlu0 %v67
  %v69 = vpop.xlane.xlu0 %68
  %v70 = vsel %vm51, %v41, 0.0
  %71 = vadd.xlane.f32.xlu0 %v70
  %v72 = vpop.xlane.xlu0 %71
  %v73 = vsel %vm51, %v42, 0.0
  %74 = vadd.xlane.f32.xlu0 %v73
  %v75 = vpop.xlane.xlu0 %74
  %v76 = vsel %vm51, %v43, 0.0
  %77 = vadd.xlane.f32.xlu0 %v76
  %v78 = vpop.xlane.xlu0 %77
  %v79 = vsel %vm51, %v44, 0.0
  %80 = vadd.xlane.f32.xlu0 %v79
  %v81 = vpop.xlane.xlu0 %80
  %v82 = vsel %vm51, %v45, 0.0
  %83 = vadd.xlane.f32.xlu0 %v82
  %v84 = vpop.xlane.xlu0 %83
  %v85 = vsel %vm51, %v46, 0.0
  %86 = vadd.xlane.f32.xlu0 %v85
  %v87 = vpop.xlane.xlu0 %86
  %v88 = vsel %vm51, %v47, 0.0
  %89 = vadd.xlane.f32.xlu0 %v88
  %v90 = vpop.xlane.xlu0 %89
  %v91 = vsel %vm51, %v48, 0.0
  %92 = vadd.xlane.f32.xlu0 %v91
  %v93 = vpop.xlane.xlu0 %92
  %v94 = vsel %vm51, %v49, 0.0
  %95 = vadd.xlane.f32.xlu0 %v94
  %v96 = vpop.xlane.xlu0 %95
  %v97 = vsel %vm51, %v50, 0.0
  %98 = vadd.xlane.f32.xlu0 %v97
  %v99 = vpop.xlane.xlu0 %98
  %v100 = vmax.f32 %v54, 1e-24
  %v101 = vmax.f32 %v57, 1e-24
  %v102 = vmax.f32 %v60, 1e-24
  %v103 = vmax.f32 %v63, 1e-24
  %v104 = vmax.f32 %v66, 1e-24
  %v105 = vmax.f32 %v69, 1e-24
  %v106 = vmax.f32 %v72, 1e-24
  %v107 = vmax.f32 %v75, 1e-24
  %v108 = vmax.f32 %v78, 1e-24
  %v109 = vmax.f32 %v81, 1e-24
  %v110 = vmax.f32 %v84, 1e-24
  %v111 = vmax.f32 %v87, 1e-24
  %v112 = vmax.f32 %v90, 1e-24
  %v113 = vmax.f32 %v93, 1e-24
  %v114 = vmax.f32 %v96, 1e-24
  %v115 = vmax.f32 %v99, 1e-24
  %v116 = vrsqrt.pop %v100
  %v117 = vrsqrt.pop %v101
  %v118 = vrsqrt.pop %v102
  %v119 = vrsqrt.pop %v103
  %v120 = vrsqrt.pop %v104
  %v121 = vrsqrt.pop %v105
  %v122 = vrsqrt.pop %v106
  %v123 = vrsqrt.pop %v107
  %v124 = vrsqrt.pop %v108
  %v125 = vrsqrt.pop %v109
  %v126 = vrsqrt.pop %v110
  %v127 = vrsqrt.pop %v111
  %v128 = vrsqrt.pop %v112
  %v129 = vrsqrt.pop %v113
  %v130 = vrsqrt.pop %v114
  %v131 = vrsqrt.pop %v115
  %v132 = vmul.f32 %v116, 10.0
  %v133 = vmul.f32 %v117, 10.0
  %v134 = vmul.f32 %v118, 10.0
  %v135 = vmul.f32 %v119, 10.0
  %v136 = vmul.f32 %v120, 10.0
  %v137 = vmul.f32 %v121, 10.0
  %v138 = vmul.f32 %v122, 10.0
  %v139 = vmul.f32 %v123, 10.0
  %v140 = vmul.f32 %v124, 10.0
  %v141 = vmul.f32 %v125, 10.0
  %v142 = vmul.f32 %v126, 10.0
  %v143 = vmul.f32 %v127, 10.0
  %v144 = vmul.f32 %v128, 10.0
  %v145 = vmul.f32 %v129, 10.0
  %v146 = vmul.f32 %v130, 10.0
  %v147 = vmul.f32 %v131, 10.0
  %v148 = vmul.f32 %v17, %v132
  %v149 = vmul.f32 %v18, %v133
  %v150 = vmul.f32 %v19, %v134
  %v151 = vmul.f32 %v20, %v135
  %v152 = vmul.f32 %v21, %v136
  %v153 = vmul.f32 %v22, %v137
  %v154 = vmul.f32 %v23, %v138
  %v155 = vmul.f32 %v24, %v139
  %v156 = vmul.f32 %v25, %v140
  %v157 = vmul.f32 %v26, %v141
  %v158 = vmul.f32 %v27, %v142
  %v159 = vmul.f32 %v28, %v143
  %v160 = vmul.f32 %v29, %v144
  %v161 = vmul.f32 %v30, %v145
  %v162 = vmul.f32 %v31, %v146
  %v163 = vmul.f32 %v32, %v147
  %v164 = vmul.f32 %v33, %v33
  %v165 = vmul.f32 %v34, %v34
  %vm166 = vcmask 519168
  %v167 = vsel %vm166, %v164, 0.0
  %v168 = vrot.slane %v167, 4
  %v169 = vadd.f32 %v167, %v168
  %v170 = vrot.slane %v169, 2
  %v171 = vadd.f32 %v169, %v170
  %v172 = vrot.slane %v171, 1
  %v173 = vadd.f32 %v171, %v172
  %v174 = vsel %vm166, %v165, 0.0
  %v175 = vrot.slane %v174, 4
  %v176 = vadd.f32 %v174, %v175
  %v177 = vrot.slane %v176, 2
  %v178 = vadd.f32 %v176, %v177
  %v179 = vrot.slane %v178, 1
  %v180 = vadd.f32 %v178, %v179
  %v181 = vmax.f32 %v173, 1e-24
  %v182 = vmax.f32 %v180, 1e-24
  %v183 = vrsqrt.pop %v181
  %v184 = vrsqrt.pop %v182
  %v185 = vmul.f32 %v33, %v183
  %v186 = vmul.f32 %v34, %v184
  %v188 = vsel %vm51, %v148, 0
  %v191 = vsel %vm51, %v149, 0
  %v194 = vsel %vm51, %v150, 0
  %v197 = vsel %vm51, %v151, 0
  %v200 = vsel %vm51, %v152, 0
  %v203 = vsel %vm51, %v153, 0
  %v206 = vsel %vm51, %v154, 0
  %v209 = vsel %vm51, %v155, 0
  %vm211 = vcmask 1043456
  %v213 = vsel %vm211, %v185, 0
  %215 = vmatprep.subr.mxu0 0.0
  %216 = vmatpush1.msra.mxu0 0.0
  %217 = vmatprep.subr.mxu0 0.0
  %218 = vmatpush1.msra.mxu0 0.0
  %219 = vmatprep.subr.mxu0 0.0
  %220 = vmatpush1.msra.mxu0 0.0
  %221 = vmatprep.subr.mxu0 0.0
  %222 = vmatpush1.msra.mxu0 0.0
  %223 = vmatprep.subr.mxu0 0.0
  %224 = vmatpush1.msra.mxu0 0.0
  %225 = vmatprep.subr.mxu0 0.0
  %226 = vmatpush1.msra.mxu0 0.0
  %227 = vmatprep.subr.mxu0 0.0
  %228 = vmatpush1.msra.mxu0 0.0
  %229 = vmatprep.subr.mxu0 0.0
  %230 = vmatpush1.msra.mxu0 0.0
  %231 = vmatprep.subr.mxu0 0.0
  %232 = vmatpush1.msra.mxu0 0.0
  %233 = vmatprep.subr.mxu0 0.0
  %234 = vmatpush1.msra.mxu0 0.0
  %235 = vmatprep.subr.mxu0 0.0
  %236 = vmatpush1.msra.mxu0 0.0
  %237 = vmatprep.subr.mxu0 0.0
  %238 = vmatpush1.msra.mxu0 0.0
  %239 = vmatprep.subr.mxu0 0.0
  %240 = vmatpush1.msra.mxu0 0.0
  %241 = vmatprep.subr.mxu0 0.0
  %242 = vmatpush1.msra.mxu0 0.0
  %243 = vmatprep.subr.mxu0 0.0
  %244 = vmatpush1.msra.mxu0 0.0
  %245 = vmatprep.subr.mxu0 0.0
  %246 = vmatpush1.msra.mxu0 %v213
  %247 = vmatprep.subr.mxu0 0.0
  %248 = vmatpush2.msra.mxu0 0.0
  %249 = vmatprep.subr.mxu0 0.0
  %250 = vmatpush2.msra.mxu0 0.0
  %251 = vmatprep.subr.mxu0 0.0
  %252 = vmatpush2.msra.mxu0 0.0
  %253 = vmatprep.subr.mxu0 0.0
  %254 = vmatpush2.msra.mxu0 0.0
  %255 = vmatprep.subr.mxu0 0.0
  %256 = vmatpush2.msra.mxu0 0.0
  %257 = vmatprep.subr.mxu0 0.0
  %258 = vmatpush2.msra.mxu0 0.0
  %259 = vmatprep.subr.mxu0 0.0
  %260 = vmatpush2.msra.mxu0 0.0
  %261 = vmatprep.subr.mxu0 0.0
  %262 = vmatpush2.msra.mxu0 0.0
  %263 = vmatprep.subr.mxu0 0.0
  %264 = vmatpush2.msra.mxu0 0.0
  %265 = vmatprep.subr.mxu0 0.0
  %266 = vmatpush2.msra.mxu0 0.0
  %267 = vmatprep.subr.mxu0 0.0
  %268 = vmatpush2.msra.mxu0 0.0
  %269 = vmatprep.subr.mxu0 0.0
  %270 = vmatpush2.msra.mxu0 0.0
  %271 = vmatprep.subr.mxu0 0.0
  %272 = vmatpush2.msra.mxu0 0.0
  %273 = vmatprep.subr.mxu0 0.0
  %274 = vmatpush2.msra.mxu0 0.0
  %275 = vmatprep.subr.mxu0 0.0
  %276 = vmatpush2.msra.mxu0 0.0
  %277 = vmatprep.subr.mxu0 0.0
  %278 = vmatpush2.msra.mxu0 0.0
  %279 = vmatprep.mubr.f32.mxu0 0.0
  %280 = vmatmul.mubr.f32.gmra.mxu0 %v188
  %v281 = vpop.f32.mrf.mxu0
  %v282 = vadd.f32 0.0, %v281
  %v283 = vpop.f32.mrf.mxu0
  %284 = vmatprep.mubr.f32.mxu0 0.0
  %285 = vmatmul.mubr.f32.gmra.mxu0 %v191
  %v286 = vpop.f32.mrf.mxu0
  %v287 = vadd.f32 0.0, %v286
  %v288 = vpop.f32.mrf.mxu0
  %289 = vmatprep.mubr.f32.mxu0 0.0
  %290 = vmatmul.mubr.f32.gmra.mxu0 %v194
  %v291 = vpop.f32.mrf.mxu0
  %v292 = vadd.f32 0.0, %v291
  %v293 = vpop.f32.mrf.mxu0
  %294 = vmatprep.mubr.f32.mxu0 0.0
  %295 = vmatmul.mubr.f32.gmra.mxu0 %v197
  %v296 = vpop.f32.mrf.mxu0
  %v297 = vadd.f32 0.0, %v296
  %v298 = vpop.f32.mrf.mxu0
  %299 = vmatprep.mubr.f32.mxu0 0.0
  %300 = vmatmul.mubr.f32.gmra.mxu0 %v200
  %v301 = vpop.f32.mrf.mxu0
  %v302 = vadd.f32 0.0, %v301
  %v303 = vpop.f32.mrf.mxu0
  %304 = vmatprep.mubr.f32.mxu0 0.0
  %305 = vmatmul.mubr.f32.gmra.mxu0 %v203
  %v306 = vpop.f32.mrf.mxu0
  %v307 = vadd.f32 0.0, %v306
  %v308 = vpop.f32.mrf.mxu0
  %309 = vmatprep.mubr.f32.mxu0 0.0
  %310 = vmatmul.mubr.f32.gmra.mxu0 %v206
  %v311 = vpop.f32.mrf.mxu0
  %v312 = vadd.f32 0.0, %v311
  %v313 = vpop.f32.mrf.mxu0
  %314 = vmatprep.mubr.f32.mxu0 0.0
  %315 = vmatmul.mubr.f32.gmra.mxu0 %v209
  %v316 = vpop.f32.mrf.mxu0
  %v317 = vadd.f32 0.0, %v316
  %v318 = vpop.f32.mrf.mxu0
  %319 = vdwg.mxu0
  %v321 = vsel %vm51, %v156, 0
  %v324 = vsel %vm51, %v157, 0
  %v327 = vsel %vm51, %v158, 0
  %v330 = vsel %vm51, %v159, 0
  %v333 = vsel %vm51, %v160, 0
  %v336 = vsel %vm51, %v161, 0
  %v339 = vsel %vm51, %v162, 0
  %v342 = vsel %vm51, %v163, 0
  %v345 = vsel %vm211, %v186, 0
  %347 = vmatprep.subr.mxu0 0.0
  %348 = vmatpush1.msra.mxu0 0.0
  %349 = vmatprep.subr.mxu0 0.0
  %350 = vmatpush1.msra.mxu0 0.0
  %351 = vmatprep.subr.mxu0 0.0
  %352 = vmatpush1.msra.mxu0 0.0
  %353 = vmatprep.subr.mxu0 0.0
  %354 = vmatpush1.msra.mxu0 0.0
  %355 = vmatprep.subr.mxu0 0.0
  %356 = vmatpush1.msra.mxu0 0.0
  %357 = vmatprep.subr.mxu0 0.0
  %358 = vmatpush1.msra.mxu0 0.0
  %359 = vmatprep.subr.mxu0 0.0
  %360 = vmatpush1.msra.mxu0 0.0
  %361 = vmatprep.subr.mxu0 0.0
  %362 = vmatpush1.msra.mxu0 0.0
  %363 = vmatprep.subr.mxu0 0.0
  %364 = vmatpush1.msra.mxu0 0.0
  %365 = vmatprep.subr.mxu0 0.0
  %366 = vmatpush1.msra.mxu0 0.0
  %367 = vmatprep.subr.mxu0 0.0
  %368 = vmatpush1.msra.mxu0 0.0
  %369 = vmatprep.subr.mxu0 0.0
  %370 = vmatpush1.msra.mxu0 0.0
  %371 = vmatprep.subr.mxu0 0.0
  %372 = vmatpush1.msra.mxu0 0.0
  %373 = vmatprep.subr.mxu0 0.0
  %374 = vmatpush1.msra.mxu0 0.0
  %375 = vmatprep.subr.mxu0 0.0
  %376 = vmatpush1.msra.mxu0 0.0
  %377 = vmatprep.subr.mxu0 0.0
  %378 = vmatpush1.msra.mxu0 %v345
  %379 = vmatprep.subr.mxu0 0.0
  %380 = vmatpush2.msra.mxu0 0.0
  %381 = vmatprep.subr.mxu0 0.0
  %382 = vmatpush2.msra.mxu0 0.0
  %383 = vmatprep.subr.mxu0 0.0
  %384 = vmatpush2.msra.mxu0 0.0
  %385 = vmatprep.subr.mxu0 0.0
  %386 = vmatpush2.msra.mxu0 0.0
  %387 = vmatprep.subr.mxu0 0.0
  %388 = vmatpush2.msra.mxu0 0.0
  %389 = vmatprep.subr.mxu0 0.0
  %390 = vmatpush2.msra.mxu0 0.0
  %391 = vmatprep.subr.mxu0 0.0
  %392 = vmatpush2.msra.mxu0 0.0
  %393 = vmatprep.subr.mxu0 0.0
  %394 = vmatpush2.msra.mxu0 0.0
  %395 = vmatprep.subr.mxu0 0.0
  %396 = vmatpush2.msra.mxu0 0.0
  %397 = vmatprep.subr.mxu0 0.0
  %398 = vmatpush2.msra.mxu0 0.0
  %399 = vmatprep.subr.mxu0 0.0
  %400 = vmatpush2.msra.mxu0 0.0
  %401 = vmatprep.subr.mxu0 0.0
  %402 = vmatpush2.msra.mxu0 0.0
  %403 = vmatprep.subr.mxu0 0.0
  %404 = vmatpush2.msra.mxu0 0.0
  %405 = vmatprep.subr.mxu0 0.0
  %406 = vmatpush2.msra.mxu0 0.0
  %407 = vmatprep.subr.mxu0 0.0
  %408 = vmatpush2.msra.mxu0 0.0
  %409 = vmatprep.subr.mxu0 0.0
  %410 = vmatpush2.msra.mxu0 0.0
  %411 = vmatprep.mubr.f32.mxu0 0.0
  %412 = vmatmul.mubr.f32.gmra.mxu0 %v321
  %v413 = vpop.f32.mrf.mxu0
  %v414 = vadd.f32 0.0, %v413
  %v415 = vpop.f32.mrf.mxu0
  %416 = vmatprep.mubr.f32.mxu0 0.0
  %417 = vmatmul.mubr.f32.gmra.mxu0 %v324
  %v418 = vpop.f32.mrf.mxu0
  %v419 = vadd.f32 0.0, %v418
  %v420 = vpop.f32.mrf.mxu0
  %421 = vmatprep.mubr.f32.mxu0 0.0
  %422 = vmatmul.mubr.f32.gmra.mxu0 %v327
  %v423 = vpop.f32.mrf.mxu0
  %v424 = vadd.f32 0.0, %v423
  %v425 = vpop.f32.mrf.mxu0
  %426 = vmatprep.mubr.f32.mxu0 0.0
  %427 = vmatmul.mubr.f32.gmra.mxu0 %v330
  %v428 = vpop.f32.mrf.mxu0
  %v429 = vadd.f32 0.0, %v428
  %v430 = vpop.f32.mrf.mxu0
  %431 = vmatprep.mubr.f32.mxu0 0.0
  %432 = vmatmul.mubr.f32.gmra.mxu0 %v333
  %v433 = vpop.f32.mrf.mxu0
  %v434 = vadd.f32 0.0, %v433
  %v435 = vpop.f32.mrf.mxu0
  %436 = vmatprep.mubr.f32.mxu0 0.0
  %437 = vmatmul.mubr.f32.gmra.mxu0 %v336
  %v438 = vpop.f32.mrf.mxu0
  %v439 = vadd.f32 0.0, %v438
  %v440 = vpop.f32.mrf.mxu0
  %441 = vmatprep.mubr.f32.mxu0 0.0
  %442 = vmatmul.mubr.f32.gmra.mxu0 %v339
  %v443 = vpop.f32.mrf.mxu0
  %v444 = vadd.f32 0.0, %v443
  %v445 = vpop.f32.mrf.mxu0
  %446 = vmatprep.mubr.f32.mxu0 0.0
  %447 = vmatmul.mubr.f32.gmra.mxu0 %v342
  %v448 = vpop.f32.mrf.mxu0
  %v449 = vadd.f32 0.0, %v448
  %v450 = vpop.f32.mrf.mxu0
  %451 = vdwg.mxu0
  %v452 = vlaneseq
  %v453 = vshrl.u32 %v452, 7
  %v454 = vadd.s32 %v453, 8
  %v455 = vadd.s32 %v453, 16
  %v456 = vadd.s32 %v453, 24
  %v457 = vadd.s32 %v453, 32
  %v458 = vadd.s32 %v453, 40
  %v459 = vadd.s32 %v453, 48
  %v460 = vadd.s32 %v453, 56
  %s461 = smul.u32 0, 64
  %v462 = vstv %s461
  %v463 = vadd.s32 %v453, %v462
  %v464 = vadd.s32 %v454, %v462
  %v465 = vadd.s32 %v455, %v462
  %v466 = vadd.s32 %v456, %v462
  %v467 = vadd.s32 %v457, %v462
  %v468 = vadd.s32 %v458, %v462
  %v469 = vadd.s32 %v459, %v462
  %v470 = vadd.s32 %v460, %v462
  %v471 = vlaneseq
  %v472 = vand.u32 %v471, 127
  %vm473 = vcmp.eq.s32.totalorder %v463, %v472
  %vm474 = vcmp.eq.s32.totalorder %v464, %v472
  %vm475 = vcmp.eq.s32.totalorder %v465, %v472
  %vm476 = vcmp.eq.s32.totalorder %v466, %v472
  %vm477 = vcmp.eq.s32.totalorder %v467, %v472
  %vm478 = vcmp.eq.s32.totalorder %v468, %v472
  %vm479 = vcmp.eq.s32.totalorder %v469, %v472
  %vm480 = vcmp.eq.s32.totalorder %v470, %v472
  %v481 = vsel %vm473, 1, 0
  %v482 = vsel %vm474, 1, 0
  %v483 = vsel %vm475, 1, 0
  %v484 = vsel %vm476, 1, 0
  %v485 = vsel %vm477, 1, 0
  %v486 = vsel %vm478, 1, 0
  %v487 = vsel %vm479, 1, 0
  %v488 = vsel %vm480, 1, 0
  %vm489 = vcmp.eq.s32.totalorder %v481, 1
  %vm490 = vcmp.eq.s32.totalorder %v482, 1
  %vm491 = vcmp.eq.s32.totalorder %v483, 1
  %vm492 = vcmp.eq.s32.totalorder %v484, 1
  %vm493 = vcmp.eq.s32.totalorder %v485, 1
  %vm494 = vcmp.eq.s32.totalorder %v486, 1
  %vm495 = vcmp.eq.s32.totalorder %v487, 1
  %vm496 = vcmp.eq.s32.totalorder %v488, 1
  %v497 = vsel %vm489, 0.0, %v282
  %v498 = vsel %vm490, 0.0, %v287
  %v499 = vsel %vm491, 0.0, %v292
  %v500 = vsel %vm492, 0.0, %v297
  %v501 = vsel %vm493, 0.0, %v302
  %v502 = vsel %vm494, 0.0, %v307
  %v503 = vsel %vm495, 0.0, %v312
  %v504 = vsel %vm496, 0.0, %v317
  %v505 = vsel %vm489, 0.0, %v414
  %v506 = vsel %vm490, 0.0, %v419
  %v507 = vsel %vm491, 0.0, %v424
  %v508 = vsel %vm492, 0.0, %v429
  %v509 = vsel %vm493, 0.0, %v434
  %v510 = vsel %vm494, 0.0, %v439
  %v511 = vsel %vm495, 0.0, %v444
  %v512 = vsel %vm496, 0.0, %v449
  %v513 = vld [vmem:[%s2] sm:$0xff]
  %v514 = vld [vmem:[%s2 + $0x8] sm:$0xff]
  %v515 = vld [vmem:[%s2 + $0x10] sm:$0xff]
  %v516 = vld [vmem:[%s2 + $0x18] sm:$0xff]
  %v517 = vld [vmem:[%s2 + $0x20] sm:$0xff]
  %v518 = vld [vmem:[%s2 + $0x28] sm:$0xff]
  %v519 = vld [vmem:[%s2 + $0x30] sm:$0xff]
  %v520 = vld [vmem:[%s2 + $0x38] sm:$0xff]
  %v521 = vld [vmem:[%s2 + $0x40] sm:$0xff]
  %v522 = vld [vmem:[%s2 + $0x48] sm:$0xff]
  %v523 = vld [vmem:[%s2 + $0x50] sm:$0xff]
  %v524 = vld [vmem:[%s2 + $0x58] sm:$0xff]
  %v525 = vld [vmem:[%s2 + $0x60] sm:$0xff]
  %v526 = vld [vmem:[%s2 + $0x68] sm:$0xff]
  %v527 = vld [vmem:[%s2 + $0x70] sm:$0xff]
  %v528 = vld [vmem:[%s2 + $0x78] sm:$0xff]
  %v529 = vld [vmem:[%s3] sm:$0x1]
  %v530 = vld [vmem:[%s3 + $0x1] sm:$0x1]
  %532 = vset.pattern.permute.xlu0 0
  %533 = vperm.xlu0 %532, %v513
  %v534 = vpop.permute.xlu0 %533
  %537 = vset.pattern.permute.xlu0 0
  %538 = vperm.xlu0 %537, %v514
  %v539 = vpop.permute.xlu0 %538
  %542 = vset.pattern.permute.xlu0 0
  %543 = vperm.xlu0 %542, %v515
  %v544 = vpop.permute.xlu0 %543
  %547 = vset.pattern.permute.xlu0 0
  %548 = vperm.xlu0 %547, %v516
  %v549 = vpop.permute.xlu0 %548
  %552 = vset.pattern.permute.xlu0 0
  %553 = vperm.xlu0 %552, %v517
  %v554 = vpop.permute.xlu0 %553
  %557 = vset.pattern.permute.xlu0 0
  %558 = vperm.xlu0 %557, %v518
  %v559 = vpop.permute.xlu0 %558
  %562 = vset.pattern.permute.xlu0 0
  %563 = vperm.xlu0 %562, %v519
  %v564 = vpop.permute.xlu0 %563
  %567 = vset.pattern.permute.xlu0 0
  %568 = vperm.xlu0 %567, %v520
  %v569 = vpop.permute.xlu0 %568
  %572 = vset.pattern.permute.xlu0 0
  %573 = vperm.xlu0 %572, %v521
  %v574 = vpop.permute.xlu0 %573
  %577 = vset.pattern.permute.xlu0 0
  %578 = vperm.xlu0 %577, %v522
  %v579 = vpop.permute.xlu0 %578
  %582 = vset.pattern.permute.xlu0 0
  %583 = vperm.xlu0 %582, %v523
  %v584 = vpop.permute.xlu0 %583
  %587 = vset.pattern.permute.xlu0 0
  %588 = vperm.xlu0 %587, %v524
  %v589 = vpop.permute.xlu0 %588
  %592 = vset.pattern.permute.xlu0 0
  %593 = vperm.xlu0 %592, %v525
  %v594 = vpop.permute.xlu0 %593
  %597 = vset.pattern.permute.xlu0 0
  %598 = vperm.xlu0 %597, %v526
  %v599 = vpop.permute.xlu0 %598
  %602 = vset.pattern.permute.xlu0 0
  %603 = vperm.xlu0 %602, %v527
  %v604 = vpop.permute.xlu0 %603
  %607 = vset.pattern.permute.xlu0 0
  %608 = vperm.xlu0 %607, %v528
  %v609 = vpop.permute.xlu0 %608
  %v613 = vlaneseq
  %v614 = vshrl.u32 %v613, 7
  %v615 = vsub.s32 0, %v614
  %v616 = vrot.slane %v529, %v615
  %v617 = vlaneseq
  %v618 = vshrl.u32 %v617, 7
  %v619 = vsub.s32 0, %v618
  %v620 = vrot.slane %v530, %v619
  %vm623 = vcmp.eq.f32.partialorder %v534, %v616
  %vm624 = vcmp.eq.f32.partialorder %v539, %v616
  %vm625 = vcmp.eq.f32.partialorder %v544, %v616
  %vm626 = vcmp.eq.f32.partialorder %v549, %v616
  %vm627 = vcmp.eq.f32.partialorder %v554, %v616
  %vm628 = vcmp.eq.f32.partialorder %v559, %v616
  %vm629 = vcmp.eq.f32.partialorder %v564, %v616
  %vm630 = vcmp.eq.f32.partialorder %v569, %v616
  %vm631 = vcmp.eq.f32.partialorder %v574, %v620
  %vm632 = vcmp.eq.f32.partialorder %v579, %v620
  %vm633 = vcmp.eq.f32.partialorder %v584, %v620
  %vm634 = vcmp.eq.f32.partialorder %v589, %v620
  %vm635 = vcmp.eq.f32.partialorder %v594, %v620
  %vm636 = vcmp.eq.f32.partialorder %v599, %v620
  %vm637 = vcmp.eq.f32.partialorder %v604, %v620
  %vm638 = vcmp.eq.f32.partialorder %v609, %v620
  %vm639 = vmxor %vm473, 1
  %vm640 = vmxor %vm474, 1
  %vm641 = vmxor %vm475, 1
  %vm642 = vmxor %vm476, 1
  %vm643 = vmxor %vm477, 1
  %vm644 = vmxor %vm478, 1
  %vm645 = vmxor %vm479, 1
  %vm646 = vmxor %vm480, 1
  %v647 = vsel %vm639, 1, 0
  %v648 = vsel %vm640, 1, 0
  %v649 = vsel %vm641, 1, 0
  %v650 = vsel %vm642, 1, 0
  %v651 = vsel %vm643, 1, 0
  %v652 = vsel %vm644, 1, 0
  %v653 = vsel %vm645, 1, 0
  %v654 = vsel %vm646, 1, 0
  %vm655 = vcmp.eq.s32.totalorder %v647, 1
  %vm656 = vcmp.eq.s32.totalorder %v648, 1
  %vm657 = vcmp.eq.s32.totalorder %v649, 1
  %vm658 = vcmp.eq.s32.totalorder %v650, 1
  %vm659 = vcmp.eq.s32.totalorder %v651, 1
  %vm660 = vcmp.eq.s32.totalorder %v652, 1
  %vm661 = vcmp.eq.s32.totalorder %v653, 1
  %vm662 = vcmp.eq.s32.totalorder %v654, 1
  %vm663 = vmand %vm623, %vm655
  %vm664 = vmand %vm624, %vm656
  %vm665 = vmand %vm625, %vm657
  %vm666 = vmand %vm626, %vm658
  %vm667 = vmand %vm627, %vm659
  %vm668 = vmand %vm628, %vm660
  %vm669 = vmand %vm629, %vm661
  %vm670 = vmand %vm630, %vm662
  %vm671 = vmand %vm631, %vm655
  %vm672 = vmand %vm632, %vm656
  %vm673 = vmand %vm633, %vm657
  %vm674 = vmand %vm634, %vm658
  %vm675 = vmand %vm635, %vm659
  %vm676 = vmand %vm636, %vm660
  %vm677 = vmand %vm637, %vm661
  %vm678 = vmand %vm638, %vm662
  %vm679 = vcmask 523264
  %v680 = vsel %vm679, %v497, -inf
  %681 = vmax.xlane.f32.xlu0 %v680
  %v682 = vpop.xlane.xlu0 %681
  %v683 = vsel %vm679, %v498, -inf
  %684 = vmax.xlane.f32.xlu0 %v683
  %v685 = vpop.xlane.xlu0 %684
  %v686 = vsel %vm679, %v499, -inf
  %687 = vmax.xlane.f32.xlu0 %v686
  %v688 = vpop.xlane.xlu0 %687
  %v689 = vsel %vm679, %v500, -inf
  %690 = vmax.xlane.f32.xlu0 %v689
  %v691 = vpop.xlane.xlu0 %690
  %v692 = vsel %vm679, %v501, -inf
  %693 = vmax.xlane.f32.xlu0 %v692
  %v694 = vpop.xlane.xlu0 %693
  %v695 = vsel %vm679, %v502, -inf
  %696 = vmax.xlane.f32.xlu0 %v695
  %v697 = vpop.xlane.xlu0 %696
  %v698 = vsel %vm679, %v503, -inf
  %699 = vmax.xlane.f32.xlu0 %v698
  %v700 = vpop.xlane.xlu0 %699
  %v701 = vsel %vm679, %v504, -inf
  %702 = vmax.xlane.f32.xlu0 %v701
  %v703 = vpop.xlane.xlu0 %702
  %v704 = vsel %vm679, %v505, -inf
  %705 = vmax.xlane.f32.xlu0 %v704
  %v706 = vpop.xlane.xlu0 %705
  %v707 = vsel %vm679, %v506, -inf
  %708 = vmax.xlane.f32.xlu0 %v707
  %v709 = vpop.xlane.xlu0 %708
  %v710 = vsel %vm679, %v507, -inf
  %711 = vmax.xlane.f32.xlu0 %v710
  %v712 = vpop.xlane.xlu0 %711
  %v713 = vsel %vm679, %v508, -inf
  %714 = vmax.xlane.f32.xlu0 %v713
  %v715 = vpop.xlane.xlu0 %714
  %v716 = vsel %vm679, %v509, -inf
  %717 = vmax.xlane.f32.xlu0 %v716
  %v718 = vpop.xlane.xlu0 %717
  %v719 = vsel %vm679, %v510, -inf
  %720 = vmax.xlane.f32.xlu0 %v719
  %v721 = vpop.xlane.xlu0 %720
  %v722 = vsel %vm679, %v511, -inf
  %723 = vmax.xlane.f32.xlu0 %v722
  %v724 = vpop.xlane.xlu0 %723
  %v725 = vsel %vm679, %v512, -inf
  %726 = vmax.xlane.f32.xlu0 %v725
  %v727 = vpop.xlane.xlu0 %726
  %v728 = vsub.f32 %v497, %v682
  %v729 = vsub.f32 %v498, %v685
  %v730 = vsub.f32 %v499, %v688
  %v731 = vsub.f32 %v500, %v691
  %v732 = vsub.f32 %v501, %v694
  %v733 = vsub.f32 %v502, %v697
  %v734 = vsub.f32 %v503, %v700
  %v735 = vsub.f32 %v504, %v703
  %v736 = vsub.f32 %v505, %v706
  %v737 = vsub.f32 %v506, %v709
  %v738 = vsub.f32 %v507, %v712
  %v739 = vsub.f32 %v508, %v715
  %v740 = vsub.f32 %v509, %v718
  %v741 = vsub.f32 %v510, %v721
  %v742 = vsub.f32 %v511, %v724
  %v743 = vsub.f32 %v512, %v727
  %v744 = vmul.f32 %v728, 1.442695
  %v745 = vpow.pop %v744
  %v746 = vmul.f32 %v729, 1.442695
  %v747 = vpow.pop %v746
  %v748 = vmul.f32 %v730, 1.442695
  %v749 = vpow.pop %v748
  %v750 = vmul.f32 %v731, 1.442695
  %v751 = vpow.pop %v750
  %v752 = vmul.f32 %v732, 1.442695
  %v753 = vpow.pop %v752
  %v754 = vmul.f32 %v733, 1.442695
  %v755 = vpow.pop %v754
  %v756 = vmul.f32 %v734, 1.442695
  %v757 = vpow.pop %v756
  %v758 = vmul.f32 %v735, 1.442695
  %v759 = vpow.pop %v758
  %v760 = vmul.f32 %v736, 1.442695
  %v761 = vpow.pop %v760
  %v762 = vmul.f32 %v737, 1.442695
  %v763 = vpow.pop %v762
  %v764 = vmul.f32 %v738, 1.442695
  %v765 = vpow.pop %v764
  %v766 = vmul.f32 %v739, 1.442695
  %v767 = vpow.pop %v766
  %v768 = vmul.f32 %v740, 1.442695
  %v769 = vpow.pop %v768
  %v770 = vmul.f32 %v741, 1.442695
  %v771 = vpow.pop %v770
  %v772 = vmul.f32 %v742, 1.442695
  %v773 = vpow.pop %v772
  %v774 = vmul.f32 %v743, 1.442695
  %v775 = vpow.pop %v774
  %v776 = vsel %vm679, %v745, 0.0
  %777 = vadd.xlane.f32.xlu0 %v776
  %v778 = vpop.xlane.xlu0 %777
  %v779 = vsel %vm679, %v747, 0.0
  %780 = vadd.xlane.f32.xlu0 %v779
  %v781 = vpop.xlane.xlu0 %780
  %v782 = vsel %vm679, %v749, 0.0
  %783 = vadd.xlane.f32.xlu0 %v782
  %v784 = vpop.xlane.xlu0 %783
  %v785 = vsel %vm679, %v751, 0.0
  %786 = vadd.xlane.f32.xlu0 %v785
  %v787 = vpop.xlane.xlu0 %786
  %v788 = vsel %vm679, %v753, 0.0
  %789 = vadd.xlane.f32.xlu0 %v788
  %v790 = vpop.xlane.xlu0 %789
  %v791 = vsel %vm679, %v755, 0.0
  %792 = vadd.xlane.f32.xlu0 %v791
  %v793 = vpop.xlane.xlu0 %792
  %v794 = vsel %vm679, %v757, 0.0
  %795 = vadd.xlane.f32.xlu0 %v794
  %v796 = vpop.xlane.xlu0 %795
  %v797 = vsel %vm679, %v759, 0.0
  %798 = vadd.xlane.f32.xlu0 %v797
  %v799 = vpop.xlane.xlu0 %798
  %v800 = vsel %vm679, %v761, 0.0
  %801 = vadd.xlane.f32.xlu0 %v800
  %v802 = vpop.xlane.xlu0 %801
  %v803 = vsel %vm679, %v763, 0.0
  %804 = vadd.xlane.f32.xlu0 %v803
  %v805 = vpop.xlane.xlu0 %804
  %v806 = vsel %vm679, %v765, 0.0
  %807 = vadd.xlane.f32.xlu0 %v806
  %v808 = vpop.xlane.xlu0 %807
  %v809 = vsel %vm679, %v767, 0.0
  %810 = vadd.xlane.f32.xlu0 %v809
  %v811 = vpop.xlane.xlu0 %810
  %v812 = vsel %vm679, %v769, 0.0
  %813 = vadd.xlane.f32.xlu0 %v812
  %v814 = vpop.xlane.xlu0 %813
  %v815 = vsel %vm679, %v771, 0.0
  %816 = vadd.xlane.f32.xlu0 %v815
  %v817 = vpop.xlane.xlu0 %816
  %v818 = vsel %vm679, %v773, 0.0
  %819 = vadd.xlane.f32.xlu0 %v818
  %v820 = vpop.xlane.xlu0 %819
  %v821 = vsel %vm679, %v775, 0.0
  %822 = vadd.xlane.f32.xlu0 %v821
  %v823 = vpop.xlane.xlu0 %822
  %v824 = vadd.f32 %v778, 1e-12
  %v825 = vadd.f32 %v781, 1e-12
  %v826 = vadd.f32 %v784, 1e-12
  %v827 = vadd.f32 %v787, 1e-12
  %v828 = vadd.f32 %v790, 1e-12
  %v829 = vadd.f32 %v793, 1e-12
  %v830 = vadd.f32 %v796, 1e-12
  %v831 = vadd.f32 %v799, 1e-12
  %v832 = vadd.f32 %v802, 1e-12
  %v833 = vadd.f32 %v805, 1e-12
  %v834 = vadd.f32 %v808, 1e-12
  %v835 = vadd.f32 %v811, 1e-12
  %v836 = vadd.f32 %v814, 1e-12
  %v837 = vadd.f32 %v817, 1e-12
  %v838 = vadd.f32 %v820, 1e-12
  %v839 = vadd.f32 %v823, 1e-12
  %v840 = vlog2.pop %v824
  %v841 = vmul.f32 %v840, 0.6931472
  %v842 = vlog2.pop %v825
  %v843 = vmul.f32 %v842, 0.6931472
  %v844 = vlog2.pop %v826
  %v845 = vmul.f32 %v844, 0.6931472
  %v846 = vlog2.pop %v827
  %v847 = vmul.f32 %v846, 0.6931472
  %v848 = vlog2.pop %v828
  %v849 = vmul.f32 %v848, 0.6931472
  %v850 = vlog2.pop %v829
  %v851 = vmul.f32 %v850, 0.6931472
  %v852 = vlog2.pop %v830
  %v853 = vmul.f32 %v852, 0.6931472
  %v854 = vlog2.pop %v831
  %v855 = vmul.f32 %v854, 0.6931472
  %v856 = vlog2.pop %v832
  %v857 = vmul.f32 %v856, 0.6931472
  %v858 = vlog2.pop %v833
  %v859 = vmul.f32 %v858, 0.6931472
  %v860 = vlog2.pop %v834
  %v861 = vmul.f32 %v860, 0.6931472
  %v862 = vlog2.pop %v835
  %v863 = vmul.f32 %v862, 0.6931472
  %v864 = vlog2.pop %v836
  %v865 = vmul.f32 %v864, 0.6931472
  %v866 = vlog2.pop %v837
  %v867 = vmul.f32 %v866, 0.6931472
  %v868 = vlog2.pop %v838
  %v869 = vmul.f32 %v868, 0.6931472
  %v870 = vlog2.pop %v839
  %v871 = vmul.f32 %v870, 0.6931472
  %v872 = vsel %vm663, 1, 0
  %v873 = vsel %vm664, 1, 0
  %v874 = vsel %vm665, 1, 0
  %v875 = vsel %vm666, 1, 0
  %v876 = vsel %vm667, 1, 0
  %v877 = vsel %vm668, 1, 0
  %v878 = vsel %vm669, 1, 0
  %v879 = vsel %vm670, 1, 0
  %v880 = vsel %vm671, 1, 0
  %v881 = vsel %vm672, 1, 0
  %v882 = vsel %vm673, 1, 0
  %v883 = vsel %vm674, 1, 0
  %v884 = vsel %vm675, 1, 0
  %v885 = vsel %vm676, 1, 0
  %v886 = vsel %vm677, 1, 0
  %v887 = vsel %vm678, 1, 0
  %v888 = vcvt.s32.f32 %v872
  %v889 = vcvt.s32.f32 %v873
  %v890 = vcvt.s32.f32 %v874
  %v891 = vcvt.s32.f32 %v875
  %v892 = vcvt.s32.f32 %v876
  %v893 = vcvt.s32.f32 %v877
  %v894 = vcvt.s32.f32 %v878
  %v895 = vcvt.s32.f32 %v879
  %v896 = vcvt.s32.f32 %v880
  %v897 = vcvt.s32.f32 %v881
  %v898 = vcvt.s32.f32 %v882
  %v899 = vcvt.s32.f32 %v883
  %v900 = vcvt.s32.f32 %v884
  %v901 = vcvt.s32.f32 %v885
  %v902 = vcvt.s32.f32 %v886
  %v903 = vcvt.s32.f32 %v887
  %v904 = vsel %vm679, %v888, 0.0
  %905 = vadd.xlane.f32.xlu0 %v904
  %v906 = vpop.xlane.xlu0 %905
  %v907 = vsel %vm679, %v889, 0.0
  %908 = vadd.xlane.f32.xlu0 %v907
  %v909 = vpop.xlane.xlu0 %908
  %v910 = vsel %vm679, %v890, 0.0
  %911 = vadd.xlane.f32.xlu0 %v910
  %v912 = vpop.xlane.xlu0 %911
  %v913 = vsel %vm679, %v891, 0.0
  %914 = vadd.xlane.f32.xlu0 %v913
  %v915 = vpop.xlane.xlu0 %914
  %v916 = vsel %vm679, %v892, 0.0
  %917 = vadd.xlane.f32.xlu0 %v916
  %v918 = vpop.xlane.xlu0 %917
  %v919 = vsel %vm679, %v893, 0.0
  %920 = vadd.xlane.f32.xlu0 %v919
  %v921 = vpop.xlane.xlu0 %920
  %v922 = vsel %vm679, %v894, 0.0
  %923 = vadd.xlane.f32.xlu0 %v922
  %v924 = vpop.xlane.xlu0 %923
  %v925 = vsel %vm679, %v895, 0.0
  %926 = vadd.xlane.f32.xlu0 %v925
  %v927 = vpop.xlane.xlu0 %926
  %v928 = vsel %vm679, %v896, 0.0
  %929 = vadd.xlane.f32.xlu0 %v928
  %v930 = vpop.xlane.xlu0 %929
  %v931 = vsel %vm679, %v897, 0.0
  %932 = vadd.xlane.f32.xlu0 %v931
  %v933 = vpop.xlane.xlu0 %932
  %v934 = vsel %vm679, %v898, 0.0
  %935 = vadd.xlane.f32.xlu0 %v934
  %v936 = vpop.xlane.xlu0 %935
  %v937 = vsel %vm679, %v899, 0.0
  %938 = vadd.xlane.f32.xlu0 %v937
  %v939 = vpop.xlane.xlu0 %938
  %v940 = vsel %vm679, %v900, 0.0
  %941 = vadd.xlane.f32.xlu0 %v940
  %v942 = vpop.xlane.xlu0 %941
  %v943 = vsel %vm679, %v901, 0.0
  %944 = vadd.xlane.f32.xlu0 %v943
  %v945 = vpop.xlane.xlu0 %944
  %v946 = vsel %vm679, %v902, 0.0
  %947 = vadd.xlane.f32.xlu0 %v946
  %v948 = vpop.xlane.xlu0 %947
  %v949 = vsel %vm679, %v903, 0.0
  %950 = vadd.xlane.f32.xlu0 %v949
  %v951 = vpop.xlane.xlu0 %950
  %v952 = vsel %vm663, %v728, 0.0
  %v953 = vsel %vm664, %v729, 0.0
  %v954 = vsel %vm665, %v730, 0.0
  %v955 = vsel %vm666, %v731, 0.0
  %v956 = vsel %vm667, %v732, 0.0
  %v957 = vsel %vm668, %v733, 0.0
  %v958 = vsel %vm669, %v734, 0.0
  %v959 = vsel %vm670, %v735, 0.0
  %v960 = vsel %vm671, %v736, 0.0
  %v961 = vsel %vm672, %v737, 0.0
  %v962 = vsel %vm673, %v738, 0.0
  %v963 = vsel %vm674, %v739, 0.0
  %v964 = vsel %vm675, %v740, 0.0
  %v965 = vsel %vm676, %v741, 0.0
  %v966 = vsel %vm677, %v742, 0.0
  %v967 = vsel %vm678, %v743, 0.0
  %v968 = vsel %vm679, %v952, 0.0
  %969 = vadd.xlane.f32.xlu0 %v968
  %v970 = vpop.xlane.xlu0 %969
  %v971 = vsel %vm679, %v953, 0.0
  %972 = vadd.xlane.f32.xlu0 %v971
  %v973 = vpop.xlane.xlu0 %972
  %v974 = vsel %vm679, %v954, 0.0
  %975 = vadd.xlane.f32.xlu0 %v974
  %v976 = vpop.xlane.xlu0 %975
  %v977 = vsel %vm679, %v955, 0.0
  %978 = vadd.xlane.f32.xlu0 %v977
  %v979 = vpop.xlane.xlu0 %978
  %v980 = vsel %vm679, %v956, 0.0
  %981 = vadd.xlane.f32.xlu0 %v980
  %v982 = vpop.xlane.xlu0 %981
  %v983 = vsel %vm679, %v957, 0.0
  %984 = vadd.xlane.f32.xlu0 %v983
  %v985 = vpop.xlane.xlu0 %984
  %v986 = vsel %vm679, %v958, 0.0
  %987 = vadd.xlane.f32.xlu0 %v986
  %v988 = vpop.xlane.xlu0 %987
  %v989 = vsel %vm679, %v959, 0.0
  %990 = vadd.xlane.f32.xlu0 %v989
  %v991 = vpop.xlane.xlu0 %990
  %v992 = vsel %vm679, %v960, 0.0
  %993 = vadd.xlane.f32.xlu0 %v992
  %v994 = vpop.xlane.xlu0 %993
  %v995 = vsel %vm679, %v961, 0.0
  %996 = vadd.xlane.f32.xlu0 %v995
  %v997 = vpop.xlane.xlu0 %996
  %v998 = vsel %vm679, %v962, 0.0
  %999 = vadd.xlane.f32.xlu0 %v998
  %v1000 = vpop.xlane.xlu0 %999
  %v1001 = vsel %vm679, %v963, 0.0
  %1002 = vadd.xlane.f32.xlu0 %v1001
  %v1003 = vpop.xlane.xlu0 %1002
  %v1004 = vsel %vm679, %v964, 0.0
  %1005 = vadd.xlane.f32.xlu0 %v1004
  %v1006 = vpop.xlane.xlu0 %1005
  %v1007 = vsel %vm679, %v965, 0.0
  %1008 = vadd.xlane.f32.xlu0 %v1007
  %v1009 = vpop.xlane.xlu0 %1008
  %v1010 = vsel %vm679, %v966, 0.0
  %1011 = vadd.xlane.f32.xlu0 %v1010
  %v1012 = vpop.xlane.xlu0 %1011
  %v1013 = vsel %vm679, %v967, 0.0
  %1014 = vadd.xlane.f32.xlu0 %v1013
  %v1015 = vpop.xlane.xlu0 %1014
  %vm1016 = vcmp.eq.f32.partialorder %v906, 0.0
  %vm1017 = vcmp.eq.f32.partialorder %v909, 0.0
  %vm1018 = vcmp.eq.f32.partialorder %v912, 0.0
  %vm1019 = vcmp.eq.f32.partialorder %v915, 0.0
  %vm1020 = vcmp.eq.f32.partialorder %v918, 0.0
  %vm1021 = vcmp.eq.f32.partialorder %v921, 0.0
  %vm1022 = vcmp.eq.f32.partialorder %v924, 0.0
  %vm1023 = vcmp.eq.f32.partialorder %v927, 0.0
  %vm1024 = vcmp.eq.f32.partialorder %v930, 0.0
  %vm1025 = vcmp.eq.f32.partialorder %v933, 0.0
  %vm1026 = vcmp.eq.f32.partialorder %v936, 0.0
  %vm1027 = vcmp.eq.f32.partialorder %v939, 0.0
  %vm1028 = vcmp.eq.f32.partialorder %v942, 0.0
  %vm1029 = vcmp.eq.f32.partialorder %v945, 0.0
  %vm1030 = vcmp.eq.f32.partialorder %v948, 0.0
  %vm1031 = vcmp.eq.f32.partialorder %v951, 0.0
  %v1032 = vsel %vm1016, 1.0, %v906
  %v1033 = vsel %vm1017, 1.0, %v909
  %v1034 = vsel %vm1018, 1.0, %v912
  %v1035 = vsel %vm1019, 1.0, %v915
  %v1036 = vsel %vm1020, 1.0, %v918
  %v1037 = vsel %vm1021, 1.0, %v921
  %v1038 = vsel %vm1022, 1.0, %v924
  %v1039 = vsel %vm1023, 1.0, %v927
  %v1040 = vsel %vm1024, 1.0, %v930
  %v1041 = vsel %vm1025, 1.0, %v933
  %v1042 = vsel %vm1026, 1.0, %v936
  %v1043 = vsel %vm1027, 1.0, %v939
  %v1044 = vsel %vm1028, 1.0, %v942
  %v1045 = vsel %vm1029, 1.0, %v945
  %v1046 = vsel %vm1030, 1.0, %v948
  %v1047 = vsel %vm1031, 1.0, %v951
  %v1048 = vmul.f32 %v906, %v841
  %v1049 = vmul.f32 %v909, %v843
  %v1050 = vmul.f32 %v912, %v845
  %v1051 = vmul.f32 %v915, %v847
  %v1052 = vmul.f32 %v918, %v849
  %v1053 = vmul.f32 %v921, %v851
  %v1054 = vmul.f32 %v924, %v853
  %v1055 = vmul.f32 %v927, %v855
  %v1056 = vmul.f32 %v930, %v857
  %v1057 = vmul.f32 %v933, %v859
  %v1058 = vmul.f32 %v936, %v861
  %v1059 = vmul.f32 %v939, %v863
  %v1060 = vmul.f32 %v942, %v865
  %v1061 = vmul.f32 %v945, %v867
  %v1062 = vmul.f32 %v948, %v869
  %v1063 = vmul.f32 %v951, %v871
  %v1064 = vsub.f32 %v970, %v1048
  %v1065 = vsub.f32 %v973, %v1049
  %v1066 = vsub.f32 %v976, %v1050
  %v1067 = vsub.f32 %v979, %v1051
  %v1068 = vsub.f32 %v982, %v1052
  %v1069 = vsub.f32 %v985, %v1053
  %v1070 = vsub.f32 %v988, %v1054
  %v1071 = vsub.f32 %v991, %v1055
  %v1072 = vsub.f32 %v994, %v1056
  %v1073 = vsub.f32 %v997, %v1057
  %v1074 = vsub.f32 %v1000, %v1058
  %v1075 = vsub.f32 %v1003, %v1059
  %v1076 = vsub.f32 %v1006, %v1060
  %v1077 = vsub.f32 %v1009, %v1061
  %v1078 = vsub.f32 %v1012, %v1062
  %v1079 = vsub.f32 %v1015, %v1063
  %v1080 = vrcp.pop %v1032
  %v1081 = vmul.f32 %v1064, %v1080
  %v1082 = vrcp.pop %v1033
  %v1083 = vmul.f32 %v1065, %v1082
  %v1084 = vrcp.pop %v1034
  %v1085 = vmul.f32 %v1066, %v1084
  %v1086 = vrcp.pop %v1035
  %v1087 = vmul.f32 %v1067, %v1086
  %v1088 = vrcp.pop %v1036
  %v1089 = vmul.f32 %v1068, %v1088
  %v1090 = vrcp.pop %v1037
  %v1091 = vmul.f32 %v1069, %v1090
  %v1092 = vrcp.pop %v1038
  %v1093 = vmul.f32 %v1070, %v1092
  %v1094 = vrcp.pop %v1039
  %v1095 = vmul.f32 %v1071, %v1094
  %v1096 = vrcp.pop %v1040
  %v1097 = vmul.f32 %v1072, %v1096
  %v1098 = vrcp.pop %v1041
  %v1099 = vmul.f32 %v1073, %v1098
  %v1100 = vrcp.pop %v1042
  %v1101 = vmul.f32 %v1074, %v1100
  %v1102 = vrcp.pop %v1043
  %v1103 = vmul.f32 %v1075, %v1102
  %v1104 = vrcp.pop %v1044
  %v1105 = vmul.f32 %v1076, %v1104
  %v1106 = vrcp.pop %v1045
  %v1107 = vmul.f32 %v1077, %v1106
  %v1108 = vrcp.pop %v1046
  %v1109 = vmul.f32 %v1078, %v1108
  %v1110 = vrcp.pop %v1047
  %v1111 = vmul.f32 %v1079, %v1110
  %v1112 = vadd.f32 %v1081, %v1083
  %v1113 = vadd.f32 %v1112, %v1085
  %v1114 = vadd.f32 %v1113, %v1087
  %v1115 = vadd.f32 %v1114, %v1089
  %v1116 = vadd.f32 %v1115, %v1091
  %v1117 = vadd.f32 %v1116, %v1093
  %v1118 = vadd.f32 %v1117, %v1095
  %v1119 = vrot.slane %v1118, 4
  %v1120 = vadd.f32 %v1118, %v1119
  %v1121 = vrot.slane %v1120, 2
  %v1122 = vadd.f32 %v1120, %v1121
  %v1123 = vrot.slane %v1122, 1
  %v1124 = vadd.f32 %v1122, %v1123
  %v1125 = vadd.f32 %v1097, %v1099
  %v1126 = vadd.f32 %v1125, %v1101
  %v1127 = vadd.f32 %v1126, %v1103
  %v1128 = vadd.f32 %v1127, %v1105
  %v1129 = vadd.f32 %v1128, %v1107
  %v1130 = vadd.f32 %v1129, %v1109
  %v1131 = vadd.f32 %v1130, %v1111
  %v1132 = vrot.slane %v1131, 4
  %v1133 = vadd.f32 %v1131, %v1132
  %v1134 = vrot.slane %v1133, 2
  %v1135 = vadd.f32 %v1133, %v1134
  %v1136 = vrot.slane %v1135, 1
  %v1137 = vadd.f32 %v1135, %v1136
  %p1138 = scmp.eq.s32.totalorder 0, 0
  // Predicated region
  $region18: #{closs_forward.1} parent=0 // pred_check
    %p1139 = pneg %p1138
  $region19: #{closs_forward.1} parent=0 // pred_check_branch
    %1141 = sbr.rel (%p1139) target = $region21
  $region20: #{closs_forward.1} parent=0 // pred_region
    %vm1142 = vcmask 0
    %1143 = vst.msk [vmem:[%s4] sm:$0x1] %vm1142, %v1124
    %1144 = vst.msk [vmem:[%s4 + $0x1] sm:$0x1] %vm1142, %v1137
  $region21: #{closs_forward.1} parent=0 // pred_fallthru
    _
  %p1145 = scmp.gt.s32.totalorder 0, 0
  // Predicated region
  $region22: #{closs_forward.1} parent=0 // pred_check
    %p1146 = pneg %p1145
  $region23: #{closs_forward.1} parent=0 // pred_check_branch
    %1148 = sbr.rel (%p1146) target = $region25
  $region24: #{closs_forward.1} parent=0 // pred_region
    %v1149 = vld [vmem:[%s4] sm:$0x1]
    %v1150 = vld [vmem:[%s4 + $0x1] sm:$0x1]
    %v1151 = vadd.f32 %v1149, %v1124
    %v1152 = vadd.f32 %v1150, %v1137
    %vm1153 = vcmask 0
    %1154 = vst.msk [vmem:[%s4] sm:$0x1] %vm1153, %v1151
    %1155 = vst.msk [vmem:[%s4 + $0x1] sm:$0x1] %vm1153, %v1152
  $region25: #{closs_forward.1} parent=0 // pred_fallthru
    _
  // Predicated region
  $region26: #{closs_forward.1} parent=0 // pred_check
    _
  $region27: #{closs_forward.1} parent=0 // pred_check_branch
    %1157 = sbr.rel (0) target = $region29
  $region28: #{closs_forward.1} parent=0 // pred_region
    _
  $region29: #{closs_forward.1} parent=0 // pred_fallthru
    _
  // Predicated region
  $region30: #{closs_forward.1} parent=0 // pred_check
    _
  $region31: #{closs_forward.1} parent=0 // pred_check_branch
    %1159 = sbr.rel (0) target = $region33
  $region32: #{closs_forward.1} parent=0 // pred_region
    _
  $region33: #{closs_forward.1} parent=0 // pred_fallthru
    _

</llo_original>
